<compile_context>
chip_gen: v6e
topology: v6e:2x2x1
jax: 0.10.0
libtpu: 0.0.40
codegen_flags: <defaults>
</compile_context>

<pallas_src>
import jax
import jax.numpy as jnp
from jax.experimental import pallas as pl
from jax.experimental.pallas import tpu as pltpu

HIDDEN_SIZE = 32
INPUT_SIZE = 1
OUTPUT_SIZE = 1


def rnn_kernel(x_ref, w_hh_ref, p_ref, out_ref):
    """Whole-sequence vanilla RNN (tanh) + final Linear, all in VMEM.

    x_ref:    (L*B, 1) time-major inputs (rows [t*B, (t+1)*B) are time t)
    w_hh_ref: (H, H)   = W_hh^T
    p_ref:    (4, H)   packed params:
                row 0 = W_ih^T (input_size == 1, so a single row)
                row 1 = b_ih + b_hh
                row 2 = W_fc row (output_size == 1)
                row 3 = [b_fc, 0, 0, ...]
    out_ref:  (B, O)
    """
    B = out_ref.shape[0]
    L = x_ref.shape[0] // B

    p = p_ref[...]                # (4, H) — single vreg tile
    w_row = p[0:1, :]             # (1, H)
    b = p[1:2, :]                 # (1, H)
    w_fc_row = p[2:3, :]          # (1, H)
    b_fc = p[3:4, 0:1]            # (1, 1)

    # Loop-invariant recurrent weight, loaded once so the MXU can keep it
    # latched across the unrolled serial accumulate steps.
    w_hh = w_hh_ref[...]          # (H, H)

    # Vectorized prologue: every u_t = x_t * W_ih^T + (b_ih + b_hh) in one
    # broadcast multiply-add.  Independent of h -> off the recurrent chain.
    u_all = x_ref[...] * w_row + b          # (L*B, H)

    # Fully unrolled tanh recurrence (L static and small).  h0 == 0, so the
    # t=0 recurrent matmul is elided exactly.
    h = jnp.tanh(u_all[0:B, :])
    for t in range(1, L):
        h = jnp.tanh(
            u_all[t * B:(t + 1) * B, :]
            + jnp.dot(h, w_hh, preferred_element_type=jnp.float32)
        )

    # Tail Linear with O == 1: VPU multiply + lane reduce instead of a second
    # MXU matmul — avoids an exposed fill/drain at the kernel epilogue.
    out_ref[...] = (
        jnp.sum(h * w_fc_row, axis=-1, keepdims=True) + b_fc
    ).astype(out_ref.dtype)


def simple_rnn_forward(x, params):
    """x: (B, L, I=1) batch-first float32.  Returns (B, O).

    Assumes the nn.RNN default zero initial hidden state (h0 == 0).
    """
    B, L, I = x.shape
    assert I == 1, "kernel specialization assumes input_size == 1"
    O = OUTPUT_SIZE

    # Layout plumbing only (no compute hoisted into the wrapper): present x
    # as a time-major (L*B, 1) column so the in-kernel input projection is a
    # single broadcast multiply-add and each u_t is a static sublane slice.
    x_lb = x[:, :, 0].T.reshape(L * B, 1)

    return pl.pallas_call(
        rnn_kernel,
        out_shape=jax.ShapeDtypeStruct((B, O), jnp.float32),
        in_specs=[pl.BlockSpec(memory_space=pltpu.MemorySpace.VMEM)] * 3,
        out_specs=pl.BlockSpec(memory_space=pltpu.MemorySpace.VMEM),
    )(x_lb, params["w_hh_t"], params["packed"])


def init_params(key, input_size=INPUT_SIZE, hidden_size=HIDDEN_SIZE,
                output_size=OUTPUT_SIZE):
    """PyTorch-default U(-1/sqrt(H), 1/sqrt(H)) init.

    Returns both the original PyTorch-style parameterization (for an
    independent reference) and the kernel-side packed/transposed tensors
    (packing done here, once, not per call).
    """
    k = 1.0 / jnp.sqrt(jnp.float32(hidden_size))
    keys = jax.random.split(key, 6)
    w_ih = jax.random.uniform(keys[0], (hidden_size, input_size), jnp.float32, -k, k)
    w_hh = jax.random.uniform(keys[1], (hidden_size, hidden_size), jnp.float32, -k, k)
    b_ih = jax.random.uniform(keys[2], (hidden_size,), jnp.float32, -k, k)
    b_hh = jax.random.uniform(keys[3], (hidden_size,), jnp.float32, -k, k)
    w_fc = jax.random.uniform(keys[4], (output_size, hidden_size), jnp.float32, -k, k)
    b_fc = jax.random.uniform(keys[5], (output_size,), jnp.float32, -k, k)

    packed = jnp.zeros((4, hidden_size), jnp.float32)
    packed = packed.at[0, :].set(w_ih[:, 0])      # W_ih^T row (I == 1)
    packed = packed.at[1, :].set(b_ih + b_hh)     # fused RNN bias
    packed = packed.at[2, :].set(w_fc[0, :])      # W_fc row (O == 1)
    packed = packed.at[3, 0].set(b_fc[0])         # fc bias scalar

    return {
        # Kernel-side params.
        "w_hh_t": w_hh.T,      # (H, H)
        "packed": packed,      # (4, H)
        # Original PyTorch parameterization for the independent reference.
        "torch": {
            "w_ih": w_ih, "w_hh": w_hh, "b_ih": b_ih, "b_hh": b_hh,
            "w_fc": w_fc, "b_fc": b_fc,
        },
    }


def reference_forward(x, params):
    """Pure-JAX reference using the ORIGINAL PyTorch parameterization
    (untransposed weights, separate b_ih / b_hh) — an independent check of
    the kernel, not a re-derivation from the kernel-side tensors."""
    tp = params["torch"]
    B, L, _ = x.shape
    H = tp["w_hh"].shape[0]
    h = jnp.zeros((B, H), jnp.float32)
    for t in range(L):
        h = jnp.tanh(x[:, t, :] @ tp["w_ih"].T + tp["b_ih"]
                     + h @ tp["w_hh"].T + tp["b_hh"])
    return h @ tp["w_fc"].T + tp["b_fc"]


if __name__ == "__main__":
    key = jax.random.PRNGKey(0)
    k_param, k_x = jax.random.split(key)

    batch, seq_len = 2, 8
    params = init_params(k_param)
    x = jax.random.normal(k_x, (batch, seq_len, INPUT_SIZE), jnp.float32)

    out = simple_rnn_forward(x, params)
    out = jax.block_until_ready(out)

    ref = reference_forward(x, params)
    assert out.shape == (batch, OUTPUT_SIZE), out.shape
    assert jnp.allclose(out, ref, atol=1e-5, rtol=1e-5), (out, ref)

    print("KERNEL_OK")
</pallas_src>

<mosaic_0001>
module attributes {stable_mosaic.version = 11 : i64} {
  func.func @rnn_kernel(%arg0: memref<16x1xf32, #tpu.memory_space<vmem>>, %arg1: memref<32x32xf32, #tpu.memory_space<vmem>>, %arg2: memref<4x32xf32, #tpu.memory_space<vmem>>, %arg3: memref<2x1xf32, #tpu.memory_space<vmem>>) attributes {dimension_semantics = [], scalar_prefetch = 0 : i64, scratch_operands = 0 : i64, tpu.core_type = #tpu.core_type<tc>} {
    %c0 = arith.constant 0 : index
    %c0_0 = arith.constant 0 : index
    %0 = vector.load %arg2[%c0, %c0_0] : memref<4x32xf32, #tpu.memory_space<vmem>>, vector<4x32xf32>
    %1 = vector.extract_strided_slice %0 {offsets = [0, 0], sizes = [1, 32], strides = [1, 1]} : vector<4x32xf32> to vector<1x32xf32>
    %2 = vector.extract_strided_slice %0 {offsets = [1, 0], sizes = [1, 32], strides = [1, 1]} : vector<4x32xf32> to vector<1x32xf32>
    %3 = vector.extract_strided_slice %0 {offsets = [2, 0], sizes = [1, 32], strides = [1, 1]} : vector<4x32xf32> to vector<1x32xf32>
    %4 = vector.extract_strided_slice %0 {offsets = [3, 0], sizes = [1, 1], strides = [1, 1]} : vector<4x32xf32> to vector<1x1xf32>
    %c0_1 = arith.constant 0 : index
    %c0_2 = arith.constant 0 : index
    %5 = vector.load %arg1[%c0_1, %c0_2] : memref<32x32xf32, #tpu.memory_space<vmem>>, vector<32x32xf32>
    %c0_3 = arith.constant 0 : index
    %c0_4 = arith.constant 0 : index
    %6 = vector.load %arg0[%c0_3, %c0_4] : memref<16x1xf32, #tpu.memory_space<vmem>>, vector<16x1xf32>
    %7 = vector.broadcast %6 : vector<16x1xf32> to vector<16x32xf32>
    %8 = vector.broadcast %1 : vector<1x32xf32> to vector<16x32xf32>
    %9 = arith.mulf %7, %8 : vector<16x32xf32>
    %10 = vector.broadcast %2 : vector<1x32xf32> to vector<16x32xf32>
    %11 = arith.addf %9, %10 : vector<16x32xf32>
    %12 = vector.extract_strided_slice %11 {offsets = [0, 0], sizes = [2, 32], strides = [1, 1]} : vector<16x32xf32> to vector<2x32xf32>
    %13 = math.tanh %12 : vector<2x32xf32>
    %14 = vector.extract_strided_slice %11 {offsets = [2, 0], sizes = [2, 32], strides = [1, 1]} : vector<16x32xf32> to vector<2x32xf32>
    %cst = arith.constant dense<0.000000e+00> : vector<2x32xf32>
    %15 = tpu.matmul %13, %5, %cst {dimension_numbers = #tpu.dot_dimension_numbers<[1], [0], [0], [1], [0, 0, 1, 1], [], []>} : vector<2x32xf32>, vector<32x32xf32>, vector<2x32xf32> -> vector<2x32xf32>
    %16 = arith.addf %14, %15 : vector<2x32xf32>
    %17 = math.tanh %16 : vector<2x32xf32>
    %18 = vector.extract_strided_slice %11 {offsets = [4, 0], sizes = [2, 32], strides = [1, 1]} : vector<16x32xf32> to vector<2x32xf32>
    %cst_5 = arith.constant dense<0.000000e+00> : vector<2x32xf32>
    %19 = tpu.matmul %17, %5, %cst_5 {dimension_numbers = #tpu.dot_dimension_numbers<[1], [0], [0], [1], [0, 0, 1, 1], [], []>} : vector<2x32xf32>, vector<32x32xf32>, vector<2x32xf32> -> vector<2x32xf32>
    %20 = arith.addf %18, %19 : vector<2x32xf32>
    %21 = math.tanh %20 : vector<2x32xf32>
    %22 = vector.extract_strided_slice %11 {offsets = [6, 0], sizes = [2, 32], strides = [1, 1]} : vector<16x32xf32> to vector<2x32xf32>
    %cst_6 = arith.constant dense<0.000000e+00> : vector<2x32xf32>
    %23 = tpu.matmul %21, %5, %cst_6 {dimension_numbers = #tpu.dot_dimension_numbers<[1], [0], [0], [1], [0, 0, 1, 1], [], []>} : vector<2x32xf32>, vector<32x32xf32>, vector<2x32xf32> -> vector<2x32xf32>
    %24 = arith.addf %22, %23 : vector<2x32xf32>
    %25 = math.tanh %24 : vector<2x32xf32>
    %26 = vector.extract_strided_slice %11 {offsets = [8, 0], sizes = [2, 32], strides = [1, 1]} : vector<16x32xf32> to vector<2x32xf32>
    %cst_7 = arith.constant dense<0.000000e+00> : vector<2x32xf32>
    %27 = tpu.matmul %25, %5, %cst_7 {dimension_numbers = #tpu.dot_dimension_numbers<[1], [0], [0], [1], [0, 0, 1, 1], [], []>} : vector<2x32xf32>, vector<32x32xf32>, vector<2x32xf32> -> vector<2x32xf32>
    %28 = arith.addf %26, %27 : vector<2x32xf32>
    %29 = math.tanh %28 : vector<2x32xf32>
    %30 = vector.extract_strided_slice %11 {offsets = [10, 0], sizes = [2, 32], strides = [1, 1]} : vector<16x32xf32> to vector<2x32xf32>
    %cst_8 = arith.constant dense<0.000000e+00> : vector<2x32xf32>
    %31 = tpu.matmul %29, %5, %cst_8 {dimension_numbers = #tpu.dot_dimension_numbers<[1], [0], [0], [1], [0, 0, 1, 1], [], []>} : vector<2x32xf32>, vector<32x32xf32>, vector<2x32xf32> -> vector<2x32xf32>
    %32 = arith.addf %30, %31 : vector<2x32xf32>
    %33 = math.tanh %32 : vector<2x32xf32>
    %34 = vector.extract_strided_slice %11 {offsets = [12, 0], sizes = [2, 32], strides = [1, 1]} : vector<16x32xf32> to vector<2x32xf32>
    %cst_9 = arith.constant dense<0.000000e+00> : vector<2x32xf32>
    %35 = tpu.matmul %33, %5, %cst_9 {dimension_numbers = #tpu.dot_dimension_numbers<[1], [0], [0], [1], [0, 0, 1, 1], [], []>} : vector<2x32xf32>, vector<32x32xf32>, vector<2x32xf32> -> vector<2x32xf32>
    %36 = arith.addf %34, %35 : vector<2x32xf32>
    %37 = math.tanh %36 : vector<2x32xf32>
    %38 = vector.extract_strided_slice %11 {offsets = [14, 0], sizes = [2, 32], strides = [1, 1]} : vector<16x32xf32> to vector<2x32xf32>
    %cst_10 = arith.constant dense<0.000000e+00> : vector<2x32xf32>
    %39 = tpu.matmul %37, %5, %cst_10 {dimension_numbers = #tpu.dot_dimension_numbers<[1], [0], [0], [1], [0, 0, 1, 1], [], []>} : vector<2x32xf32>, vector<32x32xf32>, vector<2x32xf32> -> vector<2x32xf32>
    %40 = arith.addf %38, %39 : vector<2x32xf32>
    %41 = math.tanh %40 : vector<2x32xf32>
    %42 = vector.broadcast %3 : vector<1x32xf32> to vector<2x32xf32>
    %43 = arith.mulf %41, %42 : vector<2x32xf32>
    %cst_11 = arith.constant dense<0.000000e+00> : vector<2xf32>
    %44 = vector.multi_reduction <add>, %43, %cst_11 [1] : vector<2x32xf32> to vector<2xf32>
    %45 = vector.shape_cast %44 : vector<2xf32> to vector<2x1xf32>
    %46 = vector.broadcast %4 : vector<1x1xf32> to vector<2x1xf32>
    %47 = arith.addf %45, %46 : vector<2x1xf32>
    %c0_12 = arith.constant 0 : index
    %c0_13 = arith.constant 0 : index
    %48 = vector.load %arg3[%c0_12, %c0_13] : memref<2x1xf32, #tpu.memory_space<vmem>>, vector<2x1xf32>
    tpu.vector_store %arg3[%c0_12, %c0_13], %47 {strides = array<i32>} : memref<2x1xf32, #tpu.memory_space<vmem>>, vector<2x1xf32>,
    return
  }
}

</mosaic_0001>

<llo_original>
// kernel: tpu_custom_call.1
$region0: #{tpu_custom_call.1}
  #allocation0 [shape = 'u32[]', space=smem, size = 0x4, offset = 0x4, fixed_abs, tag = 'smem constant byte address 0x4 - core index']
  #allocation1 [shape = 'u32[144,128]{1,0:T(1,128)}', space=vmem, size = 0x12000, scoped, tag = 'internal scratch']
  %s0 = inlined_call_operand.vmem [shape: f32[16,1], index: 0, kind: input, shape index: {}]
  %s1 = inlined_call_operand.hbm [shape: f32[32,32], index: 1, kind: input, shape index: {}]
  %s2 = inlined_call_operand.vmem [shape: f32[4,32], index: 2, kind: input, shape index: {}]
  %s3 = inlined_call_operand.vmem [shape: f32[2,1], index: 3, kind: output, shape index: {}]
  %s4 = sld [smem:[#allocation0]]
  $region26: #{tpu_custom_call.1} parent=0
    _
  %s6 = ssub.s32 1, %s4
  %s7 = scalar_select 0, %s6, %s4
  $region1: #{tpu_custom_call.1} parent=0
    #allocation2 [shape = 'u8[16384]{0}', space=vmem, size = 0x4000, scoped, tag = 'input window, operand 1, single buffered']
    #allocation3 [shape = 's32[1]{0}', space=sflag, size = 0x4, scoped, tag = 'scoped memory for tpu_custom_call.1']
    %8 = vsyncpa [#allocation3], 0
    // Predicated region
    $region2: #{tpu_custom_call.1} parent=1 // pred_check
      _
    $region3: #{tpu_custom_call.1} parent=1 // pred_check_branch
      %10 = sbr.rel (0) target = $region5
    $region4: #{tpu_custom_call.1} parent=1 // pred_region
      _
    $region5: #{tpu_custom_call.1} parent=1 // pred_fallthru
      _
    // Predicated region
    $region6: #{tpu_custom_call.1} parent=1 // pred_check
      _
    $region7: #{tpu_custom_call.1} parent=1 // pred_check_branch
      %12 = sbr.rel (0) target = $region9
    $region8: #{tpu_custom_call.1} parent=1 // pred_region
      %s14 = ssub.s32 512, 512
      %15 = vsyncadd [#allocation3], %s14
      %s16 = sshll.u32 [#allocation2], 4
      %s17 = int_to_ptr.vmem [resolvable:$true] %s16
      %22 = dma.hbm_to_vmem [thread:$0]  %s1, 512, %s17, [#allocation3], 128, 128, 8
    $region9: #{tpu_custom_call.1} parent=1 // pred_fallthru
      _
    // Predicated region
    $region10: #{tpu_custom_call.1} parent=1 // pred_check
      _
    $region11: #{tpu_custom_call.1} parent=1 // pred_check_branch
      %24 = sbr.rel (0) target = $region13
    $region12: #{tpu_custom_call.1} parent=1 // pred_region
      _
    $region13: #{tpu_custom_call.1} parent=1 // pred_fallthru
      _
    // Predicated region
    $region14: #{tpu_custom_call.1} parent=1 // pred_check
      _
    $region15: #{tpu_custom_call.1} parent=1 // pred_check_branch
      %26 = sbr.rel (0) target = $region17
    $region16: #{tpu_custom_call.1} parent=1 // pred_region
      %27 = dma.done [#allocation3], 512
    $region17: #{tpu_custom_call.1} parent=1 // pred_fallthru
      _
    %v28 = vld [vmem:[%s2] sm:$0xf]
    %v29 = vld [vmem:[#allocation2] sm:$0xff]
    %v30 = vld [vmem:[#allocation2 + $0x8] sm:$0xff]
    %v31 = vld [vmem:[#allocation2 + $0x10] sm:$0xff]
    %v32 = vld [vmem:[#allocation2 + $0x18] sm:$0xff]
    %v33 = vld [vmem:[%s0] sm:$0xff]
    %v34 = vld [vmem:[%s0 + $0x8] sm:$0xff]
    %36 = vset.pattern.permute.xlu0 0
    %37 = vperm.xlu0 %36, %v33
    %v38 = vpop.permute.xlu0 %37
    %41 = vset.pattern.permute.xlu0 0
    %42 = vperm.xlu0 %41, %v34
    %v43 = vpop.permute.xlu0 %42
    %v45 = vlaneseq
    %v46 = vshrl.u32 %v45, 7
    %v47 = vsub.s32 0, %v46
    %v48 = vrot.slane %v28, %v47
    %v49 = vmul.f32 %v38, %v48
    %v50 = vmul.f32 %v43, %v48
    %v51 = vlaneseq
    %v52 = vshrl.u32 %v51, 7
    %v53 = vsub.s32 1, %v52
    %v54 = vrot.slane %v28, %v53
    %v55 = vadd.f32 %v49, %v54
    %v56 = vadd.f32 %v50, %v54
    %v57 = vtanh.pop %v55
    %vm58 = vcmask 261120
    %v60 = vsel %vm58, %v57, 0
    %62 = vmatprep.subr.mxu0 0.0
    %63 = vmatpush1.msra.mxu0 0.0
    %64 = vmatprep.subr.mxu0 0.0
    %65 = vmatpush1.msra.mxu0 0.0
    %66 = vmatprep.subr.mxu0 0.0
    %67 = vmatpush1.msra.mxu0 0.0
    %68 = vmatprep.subr.mxu0 0.0
    %69 = vmatpush1.msra.mxu0 0.0
    %70 = vmatprep.subr.mxu0 0.0
    %71 = vmatpush1.msra.mxu0 0.0
    %72 = vmatprep.subr.mxu0 0.0
    %73 = vmatpush1.msra.mxu0 0.0
    %74 = vmatprep.subr.mxu0 0.0
    %75 = vmatpush1.msra.mxu0 0.0
    %76 = vmatprep.subr.mxu0 0.0
    %77 = vmatpush1.msra.mxu0 0.0
    %78 = vmatprep.subr.mxu0 0.0
    %79 = vmatpush1.msra.mxu0 0.0
    %80 = vmatprep.subr.mxu0 0.0
    %81 = vmatpush1.msra.mxu0 0.0
    %82 = vmatprep.subr.mxu0 0.0
    %83 = vmatpush1.msra.mxu0 0.0
    %84 = vmatprep.subr.mxu0 0.0
    %85 = vmatpush1.msra.mxu0 0.0
    %86 = vmatprep.subr.mxu0 0.0
    %87 = vmatpush1.msra.mxu0 %v32
    %88 = vmatprep.subr.mxu0 0.0
    %89 = vmatpush1.msra.mxu0 %v31
    %90 = vmatprep.subr.mxu0 0.0
    %91 = vmatpush1.msra.mxu0 %v30
    %92 = vmatprep.subr.mxu0 0.0
    %93 = vmatpush1.msra.mxu0 %v29
    %94 = vmatprep.subr.mxu0 0.0
    %95 = vmatpush2.msra.mxu0 0.0
    %96 = vmatprep.subr.mxu0 0.0
    %97 = vmatpush2.msra.mxu0 0.0
    %98 = vmatprep.subr.mxu0 0.0
    %99 = vmatpush2.msra.mxu0 0.0
    %100 = vmatprep.subr.mxu0 0.0
    %101 = vmatpush2.msra.mxu0 0.0
    %102 = vmatprep.subr.mxu0 0.0
    %103 = vmatpush2.msra.mxu0 0.0
    %104 = vmatprep.subr.mxu0 0.0
    %105 = vmatpush2.msra.mxu0 0.0
    %106 = vmatprep.subr.mxu0 0.0
    %107 = vmatpush2.msra.mxu0 0.0
    %108 = vmatprep.subr.mxu0 0.0
    %109 = vmatpush2.msra.mxu0 0.0
    %110 = vmatprep.subr.mxu0 0.0
    %111 = vmatpush2.msra.mxu0 0.0
    %112 = vmatprep.subr.mxu0 0.0
    %113 = vmatpush2.msra.mxu0 0.0
    %114 = vmatprep.subr.mxu0 0.0
    %115 = vmatpush2.msra.mxu0 0.0
    %116 = vmatprep.subr.mxu0 0.0
    %117 = vmatpush2.msra.mxu0 0.0
    %118 = vmatprep.subr.mxu0 0.0
    %119 = vmatpush2.msra.mxu0 0.0
    %120 = vmatprep.subr.mxu0 0.0
    %121 = vmatpush2.msra.mxu0 0.0
    %122 = vmatprep.subr.mxu0 0.0
    %123 = vmatpush2.msra.mxu0 0.0
    %124 = vmatprep.subr.mxu0 0.0
    %125 = vmatpush2.msra.mxu0 0.0
    %126 = vmatprep.mubr.f32.mxu0 0.0
    %127 = vmatmul.mubr.f32.gmra.mxu0 %v60
    %v128 = vpop.f32.mrf.mxu0
    %v129 = vadd.f32 0.0, %v128
    %v130 = vpop.f32.mrf.mxu0
    %131 = vdwg.mxu0
    %v133 = vrot.slane %v129, 6
    %v135 = vadd.f32 %v55, %v133
    %v136 = vtanh.pop %v135
    %v138 = vrot.slane %v136, 2
    %v139 = vsel %vm58, %v138, 0
    %141 = vmatprep.subr.mxu0 0.0
    %142 = vmatpush1.msra.mxu0 0.0
    %143 = vmatprep.subr.mxu0 0.0
    %144 = vmatpush1.msra.mxu0 0.0
    %145 = vmatprep.subr.mxu0 0.0
    %146 = vmatpush1.msra.mxu0 0.0
    %147 = vmatprep.subr.mxu0 0.0
    %148 = vmatpush1.msra.mxu0 0.0
    %149 = vmatprep.subr.mxu0 0.0
    %150 = vmatpush1.msra.mxu0 0.0
    %151 = vmatprep.subr.mxu0 0.0
    %152 = vmatpush1.msra.mxu0 0.0
    %153 = vmatprep.subr.mxu0 0.0
    %154 = vmatpush1.msra.mxu0 0.0
    %155 = vmatprep.subr.mxu0 0.0
    %156 = vmatpush1.msra.mxu0 0.0
    %157 = vmatprep.subr.mxu0 0.0
    %158 = vmatpush1.msra.mxu0 0.0
    %159 = vmatprep.subr.mxu0 0.0
    %160 = vmatpush1.msra.mxu0 0.0
    %161 = vmatprep.subr.mxu0 0.0
    %162 = vmatpush1.msra.mxu0 0.0
    %163 = vmatprep.subr.mxu0 0.0
    %164 = vmatpush1.msra.mxu0 0.0
    %165 = vmatprep.subr.mxu0 0.0
    %166 = vmatpush1.msra.mxu0 %v32
    %167 = vmatprep.subr.mxu0 0.0
    %168 = vmatpush1.msra.mxu0 %v31
    %169 = vmatprep.subr.mxu0 0.0
    %170 = vmatpush1.msra.mxu0 %v30
    %171 = vmatprep.subr.mxu0 0.0
    %172 = vmatpush1.msra.mxu0 %v29
    %173 = vmatprep.subr.mxu0 0.0
    %174 = vmatpush2.msra.mxu0 0.0
    %175 = vmatprep.subr.mxu0 0.0
    %176 = vmatpush2.msra.mxu0 0.0
    %177 = vmatprep.subr.mxu0 0.0
    %178 = vmatpush2.msra.mxu0 0.0
    %179 = vmatprep.subr.mxu0 0.0
    %180 = vmatpush2.msra.mxu0 0.0
    %181 = vmatprep.subr.mxu0 0.0
    %182 = vmatpush2.msra.mxu0 0.0
    %183 = vmatprep.subr.mxu0 0.0
    %184 = vmatpush2.msra.mxu0 0.0
    %185 = vmatprep.subr.mxu0 0.0
    %186 = vmatpush2.msra.mxu0 0.0
    %187 = vmatprep.subr.mxu0 0.0
    %188 = vmatpush2.msra.mxu0 0.0
    %189 = vmatprep.subr.mxu0 0.0
    %190 = vmatpush2.msra.mxu0 0.0
    %191 = vmatprep.subr.mxu0 0.0
    %192 = vmatpush2.msra.mxu0 0.0
    %193 = vmatprep.subr.mxu0 0.0
    %194 = vmatpush2.msra.mxu0 0.0
    %195 = vmatprep.subr.mxu0 0.0
    %196 = vmatpush2.msra.mxu0 0.0
    %197 = vmatprep.subr.mxu0 0.0
    %198 = vmatpush2.msra.mxu0 0.0
    %199 = vmatprep.subr.mxu0 0.0
    %200 = vmatpush2.msra.mxu0 0.0
    %201 = vmatprep.subr.mxu0 0.0
    %202 = vmatpush2.msra.mxu0 0.0
    %203 = vmatprep.subr.mxu0 0.0
    %204 = vmatpush2.msra.mxu0 0.0
    %205 = vmatprep.mubr.f32.mxu0 0.0
    %206 = vmatmul.mubr.f32.gmra.mxu0 %v139
    %v207 = vpop.f32.mrf.mxu0
    %v208 = vadd.f32 0.0, %v207
    %v209 = vpop.f32.mrf.mxu0
    %210 = vdwg.mxu0
    %v212 = vrot.slane %v208, 4
    %v214 = vadd.f32 %v55, %v212
    %v215 = vtanh.pop %v214
    %v217 = vrot.slane %v215, 4
    %v218 = vsel %vm58, %v217, 0
    %220 = vmatprep.subr.mxu0 0.0
    %221 = vmatpush1.msra.mxu0 0.0
    %222 = vmatprep.subr.mxu0 0.0
    %223 = vmatpush1.msra.mxu0 0.0
    %224 = vmatprep.subr.mxu0 0.0
    %225 = vmatpush1.msra.mxu0 0.0
    %226 = vmatprep.subr.mxu0 0.0
    %227 = vmatpush1.msra.mxu0 0.0
    %228 = vmatprep.subr.mxu0 0.0
    %229 = vmatpush1.msra.mxu0 0.0
    %230 = vmatprep.subr.mxu0 0.0
    %231 = vmatpush1.msra.mxu0 0.0
    %232 = vmatprep.subr.mxu0 0.0
    %233 = vmatpush1.msra.mxu0 0.0
    %234 = vmatprep.subr.mxu0 0.0
    %235 = vmatpush1.msra.mxu0 0.0
    %236 = vmatprep.subr.mxu0 0.0
    %237 = vmatpush1.msra.mxu0 0.0
    %238 = vmatprep.subr.mxu0 0.0
    %239 = vmatpush1.msra.mxu0 0.0
    %240 = vmatprep.subr.mxu0 0.0
    %241 = vmatpush1.msra.mxu0 0.0
    %242 = vmatprep.subr.mxu0 0.0
    %243 = vmatpush1.msra.mxu0 0.0
    %244 = vmatprep.subr.mxu0 0.0
    %245 = vmatpush1.msra.mxu0 %v32
    %246 = vmatprep.subr.mxu0 0.0
    %247 = vmatpush1.msra.mxu0 %v31
    %248 = vmatprep.subr.mxu0 0.0
    %249 = vmatpush1.msra.mxu0 %v30
    %250 = vmatprep.subr.mxu0 0.0
    %251 = vmatpush1.msra.mxu0 %v29
    %252 = vmatprep.subr.mxu0 0.0
    %253 = vmatpush2.msra.mxu0 0.0
    %254 = vmatprep.subr.mxu0 0.0
    %255 = vmatpush2.msra.mxu0 0.0
    %256 = vmatprep.subr.mxu0 0.0
    %257 = vmatpush2.msra.mxu0 0.0
    %258 = vmatprep.subr.mxu0 0.0
    %259 = vmatpush2.msra.mxu0 0.0
    %260 = vmatprep.subr.mxu0 0.0
    %261 = vmatpush2.msra.mxu0 0.0
    %262 = vmatprep.subr.mxu0 0.0
    %263 = vmatpush2.msra.mxu0 0.0
    %264 = vmatprep.subr.mxu0 0.0
    %265 = vmatpush2.msra.mxu0 0.0
    %266 = vmatprep.subr.mxu0 0.0
    %267 = vmatpush2.msra.mxu0 0.0
    %268 = vmatprep.subr.mxu0 0.0
    %269 = vmatpush2.msra.mxu0 0.0
    %270 = vmatprep.subr.mxu0 0.0
    %271 = vmatpush2.msra.mxu0 0.0
    %272 = vmatprep.subr.mxu0 0.0
    %273 = vmatpush2.msra.mxu0 0.0
    %274 = vmatprep.subr.mxu0 0.0
    %275 = vmatpush2.msra.mxu0 0.0
    %276 = vmatprep.subr.mxu0 0.0
    %277 = vmatpush2.msra.mxu0 0.0
    %278 = vmatprep.subr.mxu0 0.0
    %279 = vmatpush2.msra.mxu0 0.0
    %280 = vmatprep.subr.mxu0 0.0
    %281 = vmatpush2.msra.mxu0 0.0
    %282 = vmatprep.subr.mxu0 0.0
    %283 = vmatpush2.msra.mxu0 0.0
    %284 = vmatprep.mubr.f32.mxu0 0.0
    %285 = vmatmul.mubr.f32.gmra.mxu0 %v218
    %v286 = vpop.f32.mrf.mxu0
    %v287 = vadd.f32 0.0, %v286
    %v288 = vpop.f32.mrf.mxu0
    %289 = vdwg.mxu0
    %v291 = vrot.slane %v287, 2
    %v293 = vadd.f32 %v55, %v291
    %v294 = vtanh.pop %v293
    %v296 = vrot.slane %v294, 6
    %v297 = vsel %vm58, %v296, 0
    %299 = vmatprep.subr.mxu0 0.0
    %300 = vmatpush1.msra.mxu0 0.0
    %301 = vmatprep.subr.mxu0 0.0
    %302 = vmatpush1.msra.mxu0 0.0
    %303 = vmatprep.subr.mxu0 0.0
    %304 = vmatpush1.msra.mxu0 0.0
    %305 = vmatprep.subr.mxu0 0.0
    %306 = vmatpush1.msra.mxu0 0.0
    %307 = vmatprep.subr.mxu0 0.0
    %308 = vmatpush1.msra.mxu0 0.0
    %309 = vmatprep.subr.mxu0 0.0
    %310 = vmatpush1.msra.mxu0 0.0
    %311 = vmatprep.subr.mxu0 0.0
    %312 = vmatpush1.msra.mxu0 0.0
    %313 = vmatprep.subr.mxu0 0.0
    %314 = vmatpush1.msra.mxu0 0.0
    %315 = vmatprep.subr.mxu0 0.0
    %316 = vmatpush1.msra.mxu0 0.0
    %317 = vmatprep.subr.mxu0 0.0
    %318 = vmatpush1.msra.mxu0 0.0
    %319 = vmatprep.subr.mxu0 0.0
    %320 = vmatpush1.msra.mxu0 0.0
    %321 = vmatprep.subr.mxu0 0.0
    %322 = vmatpush1.msra.mxu0 0.0
    %323 = vmatprep.subr.mxu0 0.0
    %324 = vmatpush1.msra.mxu0 %v32
    %325 = vmatprep.subr.mxu0 0.0
    %326 = vmatpush1.msra.mxu0 %v31
    %327 = vmatprep.subr.mxu0 0.0
    %328 = vmatpush1.msra.mxu0 %v30
    %329 = vmatprep.subr.mxu0 0.0
    %330 = vmatpush1.msra.mxu0 %v29
    %331 = vmatprep.subr.mxu0 0.0
    %332 = vmatpush2.msra.mxu0 0.0
    %333 = vmatprep.subr.mxu0 0.0
    %334 = vmatpush2.msra.mxu0 0.0
    %335 = vmatprep.subr.mxu0 0.0
    %336 = vmatpush2.msra.mxu0 0.0
    %337 = vmatprep.subr.mxu0 0.0
    %338 = vmatpush2.msra.mxu0 0.0
    %339 = vmatprep.subr.mxu0 0.0
    %340 = vmatpush2.msra.mxu0 0.0
    %341 = vmatprep.subr.mxu0 0.0
    %342 = vmatpush2.msra.mxu0 0.0
    %343 = vmatprep.subr.mxu0 0.0
    %344 = vmatpush2.msra.mxu0 0.0
    %345 = vmatprep.subr.mxu0 0.0
    %346 = vmatpush2.msra.mxu0 0.0
    %347 = vmatprep.subr.mxu0 0.0
    %348 = vmatpush2.msra.mxu0 0.0
    %349 = vmatprep.subr.mxu0 0.0
    %350 = vmatpush2.msra.mxu0 0.0
    %351 = vmatprep.subr.mxu0 0.0
    %352 = vmatpush2.msra.mxu0 0.0
    %353 = vmatprep.subr.mxu0 0.0
    %354 = vmatpush2.msra.mxu0 0.0
    %355 = vmatprep.subr.mxu0 0.0
    %356 = vmatpush2.msra.mxu0 0.0
    %357 = vmatprep.subr.mxu0 0.0
    %358 = vmatpush2.msra.mxu0 0.0
    %359 = vmatprep.subr.mxu0 0.0
    %360 = vmatpush2.msra.mxu0 0.0
    %361 = vmatprep.subr.mxu0 0.0
    %362 = vmatpush2.msra.mxu0 0.0
    %363 = vmatprep.mubr.f32.mxu0 0.0
    %364 = vmatmul.mubr.f32.gmra.mxu0 %v297
    %v365 = vpop.f32.mrf.mxu0
    %v366 = vadd.f32 0.0, %v365
    %v367 = vpop.f32.mrf.mxu0
    %368 = vdwg.mxu0
    %v369 = vadd.f32 %v56, %v366
    %v370 = vtanh.pop %v369
    %v372 = vsel %vm58, %v370, 0
    %374 = vmatprep.subr.mxu0 0.0
    %375 = vmatpush1.msra.mxu0 0.0
    %376 = vmatprep.subr.mxu0 0.0
    %377 = vmatpush1.msra.mxu0 0.0
    %378 = vmatprep.subr.mxu0 0.0
    %379 = vmatpush1.msra.mxu0 0.0
    %380 = vmatprep.subr.mxu0 0.0
    %381 = vmatpush1.msra.mxu0 0.0
    %382 = vmatprep.subr.mxu0 0.0
    %383 = vmatpush1.msra.mxu0 0.0
    %384 = vmatprep.subr.mxu0 0.0
    %385 = vmatpush1.msra.mxu0 0.0
    %386 = vmatprep.subr.mxu0 0.0
    %387 = vmatpush1.msra.mxu0 0.0
    %388 = vmatprep.subr.mxu0 0.0
    %389 = vmatpush1.msra.mxu0 0.0
    %390 = vmatprep.subr.mxu0 0.0
    %391 = vmatpush1.msra.mxu0 0.0
    %392 = vmatprep.subr.mxu0 0.0
    %393 = vmatpush1.msra.mxu0 0.0
    %394 = vmatprep.subr.mxu0 0.0
    %395 = vmatpush1.msra.mxu0 0.0
    %396 = vmatprep.subr.mxu0 0.0
    %397 = vmatpush1.msra.mxu0 0.0
    %398 = vmatprep.subr.mxu0 0.0
    %399 = vmatpush1.msra.mxu0 %v32
    %400 = vmatprep.subr.mxu0 0.0
    %401 = vmatpush1.msra.mxu0 %v31
    %402 = vmatprep.subr.mxu0 0.0
    %403 = vmatpush1.msra.mxu0 %v30
    %404 = vmatprep.subr.mxu0 0.0
    %405 = vmatpush1.msra.mxu0 %v29
    %406 = vmatprep.subr.mxu0 0.0
    %407 = vmatpush2.msra.mxu0 0.0
    %408 = vmatprep.subr.mxu0 0.0
    %409 = vmatpush2.msra.mxu0 0.0
    %410 = vmatprep.subr.mxu0 0.0
    %411 = vmatpush2.msra.mxu0 0.0
    %412 = vmatprep.subr.mxu0 0.0
    %413 = vmatpush2.msra.mxu0 0.0
    %414 = vmatprep.subr.mxu0 0.0
    %415 = vmatpush2.msra.mxu0 0.0
    %416 = vmatprep.subr.mxu0 0.0
    %417 = vmatpush2.msra.mxu0 0.0
    %418 = vmatprep.subr.mxu0 0.0
    %419 = vmatpush2.msra.mxu0 0.0
    %420 = vmatprep.subr.mxu0 0.0
    %421 = vmatpush2.msra.mxu0 0.0
    %422 = vmatprep.subr.mxu0 0.0
    %423 = vmatpush2.msra.mxu0 0.0
    %424 = vmatprep.subr.mxu0 0.0
    %425 = vmatpush2.msra.mxu0 0.0
    %426 = vmatprep.subr.mxu0 0.0
    %427 = vmatpush2.msra.mxu0 0.0
    %428 = vmatprep.subr.mxu0 0.0
    %429 = vmatpush2.msra.mxu0 0.0
    %430 = vmatprep.subr.mxu0 0.0
    %431 = vmatpush2.msra.mxu0 0.0
    %432 = vmatprep.subr.mxu0 0.0
    %433 = vmatpush2.msra.mxu0 0.0
    %434 = vmatprep.subr.mxu0 0.0
    %435 = vmatpush2.msra.mxu0 0.0
    %436 = vmatprep.subr.mxu0 0.0
    %437 = vmatpush2.msra.mxu0 0.0
    %438 = vmatprep.mubr.f32.mxu0 0.0
    %439 = vmatmul.mubr.f32.gmra.mxu0 %v372
    %v440 = vpop.f32.mrf.mxu0
    %v441 = vadd.f32 0.0, %v440
    %v442 = vpop.f32.mrf.mxu0
    %443 = vdwg.mxu0
    %v445 = vrot.slane %v441, 6
    %v447 = vadd.f32 %v56, %v445
    %v448 = vtanh.pop %v447
    %v450 = vrot.slane %v448, 2
    %v451 = vsel %vm58, %v450, 0
    %453 = vmatprep.subr.mxu0 0.0
    %454 = vmatpush1.msra.mxu0 0.0
    %455 = vmatprep.subr.mxu0 0.0
    %456 = vmatpush1.msra.mxu0 0.0
    %457 = vmatprep.subr.mxu0 0.0
    %458 = vmatpush1.msra.mxu0 0.0
    %459 = vmatprep.subr.mxu0 0.0
    %460 = vmatpush1.msra.mxu0 0.0
    %461 = vmatprep.subr.mxu0 0.0
    %462 = vmatpush1.msra.mxu0 0.0
    %463 = vmatprep.subr.mxu0 0.0
    %464 = vmatpush1.msra.mxu0 0.0
    %465 = vmatprep.subr.mxu0 0.0
    %466 = vmatpush1.msra.mxu0 0.0
    %467 = vmatprep.subr.mxu0 0.0
    %468 = vmatpush1.msra.mxu0 0.0
    %469 = vmatprep.subr.mxu0 0.0
    %470 = vmatpush1.msra.mxu0 0.0
    %471 = vmatprep.subr.mxu0 0.0
    %472 = vmatpush1.msra.mxu0 0.0
    %473 = vmatprep.subr.mxu0 0.0
    %474 = vmatpush1.msra.mxu0 0.0
    %475 = vmatprep.subr.mxu0 0.0
    %476 = vmatpush1.msra.mxu0 0.0
    %477 = vmatprep.subr.mxu0 0.0
    %478 = vmatpush1.msra.mxu0 %v32
    %479 = vmatprep.subr.mxu0 0.0
    %480 = vmatpush1.msra.mxu0 %v31
    %481 = vmatprep.subr.mxu0 0.0
    %482 = vmatpush1.msra.mxu0 %v30
    %483 = vmatprep.subr.mxu0 0.0
    %484 = vmatpush1.msra.mxu0 %v29
    %485 = vmatprep.subr.mxu0 0.0
    %486 = vmatpush2.msra.mxu0 0.0
    %487 = vmatprep.subr.mxu0 0.0
    %488 = vmatpush2.msra.mxu0 0.0
    %489 = vmatprep.subr.mxu0 0.0
    %490 = vmatpush2.msra.mxu0 0.0
    %491 = vmatprep.subr.mxu0 0.0
    %492 = vmatpush2.msra.mxu0 0.0
    %493 = vmatprep.subr.mxu0 0.0
    %494 = vmatpush2.msra.mxu0 0.0
    %495 = vmatprep.subr.mxu0 0.0
    %496 = vmatpush2.msra.mxu0 0.0
    %497 = vmatprep.subr.mxu0 0.0
    %498 = vmatpush2.msra.mxu0 0.0
    %499 = vmatprep.subr.mxu0 0.0
    %500 = vmatpush2.msra.mxu0 0.0
    %501 = vmatprep.subr.mxu0 0.0
    %502 = vmatpush2.msra.mxu0 0.0
    %503 = vmatprep.subr.mxu0 0.0
    %504 = vmatpush2.msra.mxu0 0.0
    %505 = vmatprep.subr.mxu0 0.0
    %506 = vmatpush2.msra.mxu0 0.0
    %507 = vmatprep.subr.mxu0 0.0
    %508 = vmatpush2.msra.mxu0 0.0
    %509 = vmatprep.subr.mxu0 0.0
    %510 = vmatpush2.msra.mxu0 0.0
    %511 = vmatprep.subr.mxu0 0.0
    %512 = vmatpush2.msra.mxu0 0.0
    %513 = vmatprep.subr.mxu0 0.0
    %514 = vmatpush2.msra.mxu0 0.0
    %515 = vmatprep.subr.mxu0 0.0
    %516 = vmatpush2.msra.mxu0 0.0
    %517 = vmatprep.mubr.f32.mxu0 0.0
    %518 = vmatmul.mubr.f32.gmra.mxu0 %v451
    %v519 = vpop.f32.mrf.mxu0
    %v520 = vadd.f32 0.0, %v519
    %v521 = vpop.f32.mrf.mxu0
    %522 = vdwg.mxu0
    %v524 = vrot.slane %v520, 4
    %v526 = vadd.f32 %v56, %v524
    %v527 = vtanh.pop %v526
    %v529 = vrot.slane %v527, 4
    %v530 = vsel %vm58, %v529, 0
    %532 = vmatprep.subr.mxu0 0.0
    %533 = vmatpush1.msra.mxu0 0.0
    %534 = vmatprep.subr.mxu0 0.0
    %535 = vmatpush1.msra.mxu0 0.0
    %536 = vmatprep.subr.mxu0 0.0
    %537 = vmatpush1.msra.mxu0 0.0
    %538 = vmatprep.subr.mxu0 0.0
    %539 = vmatpush1.msra.mxu0 0.0
    %540 = vmatprep.subr.mxu0 0.0
    %541 = vmatpush1.msra.mxu0 0.0
    %542 = vmatprep.subr.mxu0 0.0
    %543 = vmatpush1.msra.mxu0 0.0
    %544 = vmatprep.subr.mxu0 0.0
    %545 = vmatpush1.msra.mxu0 0.0
    %546 = vmatprep.subr.mxu0 0.0
    %547 = vmatpush1.msra.mxu0 0.0
    %548 = vmatprep.subr.mxu0 0.0
    %549 = vmatpush1.msra.mxu0 0.0
    %550 = vmatprep.subr.mxu0 0.0
    %551 = vmatpush1.msra.mxu0 0.0
    %552 = vmatprep.subr.mxu0 0.0
    %553 = vmatpush1.msra.mxu0 0.0
    %554 = vmatprep.subr.mxu0 0.0
    %555 = vmatpush1.msra.mxu0 0.0
    %556 = vmatprep.subr.mxu0 0.0
    %557 = vmatpush1.msra.mxu0 %v32
    %558 = vmatprep.subr.mxu0 0.0
    %559 = vmatpush1.msra.mxu0 %v31
    %560 = vmatprep.subr.mxu0 0.0
    %561 = vmatpush1.msra.mxu0 %v30
    %562 = vmatprep.subr.mxu0 0.0
    %563 = vmatpush1.msra.mxu0 %v29
    %564 = vmatprep.subr.mxu0 0.0
    %565 = vmatpush2.msra.mxu0 0.0
    %566 = vmatprep.subr.mxu0 0.0
    %567 = vmatpush2.msra.mxu0 0.0
    %568 = vmatprep.subr.mxu0 0.0
    %569 = vmatpush2.msra.mxu0 0.0
    %570 = vmatprep.subr.mxu0 0.0
    %571 = vmatpush2.msra.mxu0 0.0
    %572 = vmatprep.subr.mxu0 0.0
    %573 = vmatpush2.msra.mxu0 0.0
    %574 = vmatprep.subr.mxu0 0.0
    %575 = vmatpush2.msra.mxu0 0.0
    %576 = vmatprep.subr.mxu0 0.0
    %577 = vmatpush2.msra.mxu0 0.0
    %578 = vmatprep.subr.mxu0 0.0
    %579 = vmatpush2.msra.mxu0 0.0
    %580 = vmatprep.subr.mxu0 0.0
    %581 = vmatpush2.msra.mxu0 0.0
    %582 = vmatprep.subr.mxu0 0.0
    %583 = vmatpush2.msra.mxu0 0.0
    %584 = vmatprep.subr.mxu0 0.0
    %585 = vmatpush2.msra.mxu0 0.0
    %586 = vmatprep.subr.mxu0 0.0
    %587 = vmatpush2.msra.mxu0 0.0
    %588 = vmatprep.subr.mxu0 0.0
    %589 = vmatpush2.msra.mxu0 0.0
    %590 = vmatprep.subr.mxu0 0.0
    %591 = vmatpush2.msra.mxu0 0.0
    %592 = vmatprep.subr.mxu0 0.0
    %593 = vmatpush2.msra.mxu0 0.0
    %594 = vmatprep.subr.mxu0 0.0
    %595 = vmatpush2.msra.mxu0 0.0
    %596 = vmatprep.mubr.f32.mxu0 0.0
    %597 = vmatmul.mubr.f32.gmra.mxu0 %v530
    %v598 = vpop.f32.mrf.mxu0
    %v599 = vadd.f32 0.0, %v598
    %v600 = vpop.f32.mrf.mxu0
    %601 = vdwg.mxu0
    %v603 = vrot.slane %v599, 2
    %v605 = vadd.f32 %v56, %v603
    %v606 = vtanh.pop %v605
    %v607 = vlaneseq
    %v608 = vshrl.u32 %v607, 7
    %v609 = vsub.s32 2, %v608
    %v610 = vrot.slane %v28, %v609
    %v611 = vmul.f32 %v606, %v610
    %vm612 = vcmask 261126
    %v613 = vsel %vm612, %v611, 0.0
    %614 = vadd.xlane.f32.xlu0 %v613
    %v615 = vpop.xlane.xlu0 %614
    %v616 = vlaneseq
    %v617 = vshrl.u32 %v616, 7
    %v618 = vsub.s32 3, %v617
    %v619 = vrot.slane %v28, %v618
    %v620 = vadd.f32 %v615, %v619
    %vm621 = vcmask 7174
    %622 = vst.msk [vmem:[%s3 - $0x6] sm:$0xc0] %vm621, %v620
    // Predicated region
    $region18: #{tpu_custom_call.1} parent=1 // pred_check
      _
    $region19: #{tpu_custom_call.1} parent=1 // pred_check_branch
      %624 = sbr.rel (0) target = $region21
    $region20: #{tpu_custom_call.1} parent=1 // pred_region
      _
    $region21: #{tpu_custom_call.1} parent=1 // pred_fallthru
      _
    // Predicated region
    $region22: #{tpu_custom_call.1} parent=1 // pred_check
      _
    $region23: #{tpu_custom_call.1} parent=1 // pred_check_branch
      %626 = sbr.rel (0) target = $region25
    $region24: #{tpu_custom_call.1} parent=1 // pred_region
      _
    $region25: #{tpu_custom_call.1} parent=1 // pred_fallthru
      _
    %627 = vsyncpa [#allocation3], 1

</llo_original>
